<compile_context>
chip_gen: v5e
topology: v5e:2x2
jax: 0.10.0
libtpu: 0.0.40
codegen_flags: <defaults>
</compile_context>

<pallas_src>
import jax
import jax.numpy as jnp
from jax.experimental import pallas as pl
from jax.experimental.pallas import tpu as pltpu

A_SLOPE = 0.05


def _leaky_recu_kernel(x_ref, o_ref):
    x = x_ref[...]
    # where(x>=0, 1 + a*x, a*x)  ==  a*x + (x>=0 ? 1 : 0)
    o_ref[...] = A_SLOPE * x + (x >= 0).astype(x.dtype)


def leaky_recu(x: jax.Array, *, block_rows: int = 512, max_lane: int = 2048) -> jax.Array:
    """Apply LeakyReCU elementwise. x may be any shape (e.g. NCHW)."""
    orig_shape = x.shape
    orig_dtype = x.dtype
    n = x.size
    if n == 0:
        return x

    flat = x.reshape(-1)

    # Pick the widest lane-dense last dim (multiple of 128) that divides n,
    # so no padding copy is needed in the common case.
    lane = None
    for cand in (max_lane, 1024, 512, 256, 128):
        if cand % 128 == 0 and n % cand == 0:
            lane = cand
            break

    padded = False
    if lane is None:
        # Fallback: minimal padding up to a multiple of 128 lanes.
        lane = 128
        n_total = pl.cdiv(n, lane) * lane
        flat = jnp.pad(flat, (0, n_total - n))
        padded = True
    else:
        n_total = n

    rows = n_total // lane
    x2d = flat.reshape(rows, lane)

    # Block rows: either a multiple of 8 (default 512 -> ~2 MiB f32 blocks with
    # lane=1024) or the full row extent for small inputs.
    if rows <= block_rows:
        br = rows
    else:
        br = (block_rows // 8) * 8 or 8

    grid = (pl.cdiv(rows, br),)

    out2d = pl.pallas_call(
        _leaky_recu_kernel,
        out_shape=jax.ShapeDtypeStruct((rows, lane), orig_dtype),
        grid_spec=pltpu.PrefetchScalarGridSpec(
            num_scalar_prefetch=0,
            grid=grid,
            in_specs=[pl.BlockSpec((br, lane), lambda i: (i, 0))],
            out_specs=pl.BlockSpec((br, lane), lambda i: (i, 0)),
        ),
        compiler_params=pltpu.CompilerParams(
            dimension_semantics=("parallel",),
        ),
    )(x2d)

    if padded:
        return out2d.reshape(-1)[:n].reshape(orig_shape)
    return out2d.reshape(orig_shape)


def leaky_recu_ref(x: jax.Array) -> jax.Array:
    return jnp.where(x >= 0, jnp.ones_like(x) + A_SLOPE * x,
                     jnp.zeros_like(x) + A_SLOPE * x)


if __name__ == "__main__":
    key = jax.random.PRNGKey(0)
    # NCHW input, small shape consistent with the PyTorch module usage.
    x = jax.random.normal(key, (2, 4, 16, 16), dtype=jnp.float32)

    y = leaky_recu(x)
    y = jax.block_until_ready(y)

    y_ref = leaky_recu_ref(x)
    assert y.shape == x.shape and y.dtype == x.dtype
    assert jnp.allclose(y, y_ref, atol=1e-6, rtol=1e-6), "mismatch vs reference"

    # Also exercise a larger, multi-block case (hits the 512x1024 tiling path).
    x_big = jax.random.normal(jax.random.PRNGKey(1), (8, 16, 64, 64), dtype=jnp.float32)
    y_big = jax.block_until_ready(leaky_recu(x_big))
    assert jnp.allclose(y_big, leaky_recu_ref(x_big), atol=1e-6, rtol=1e-6)

    print("KERNEL_OK")
</pallas_src>

<mosaic_0001>
module attributes {stable_mosaic.version = 11 : i64} {
  func.func @_leaky_recu_kernel(%arg0: i32, %arg1: memref<1x2048xf32, #tpu.memory_space<vmem>>, %arg2: memref<1x2048xf32, #tpu.memory_space<vmem>>) attributes {dimension_semantics = [#tpu.dimension_semantics<parallel>], iteration_bounds = array<i64: 1>, scalar_prefetch = 0 : i64, scratch_operands = 0 : i64, tpu.core_type = #tpu.core_type<tc>, window_params = [{transform_indices = @transform_0, window_bounds = array<i64: 1, 2048>}, {transform_indices = @transform_1, window_bounds = array<i64: 1, 2048>}]} {
    %c0 = arith.constant 0 : index
    %c0_0 = arith.constant 0 : index
    %0 = vector.load %arg1[%c0, %c0_0] : memref<1x2048xf32, #tpu.memory_space<vmem>>, vector<1x2048xf32>
    %cst = arith.constant 5.000000e-02 : f32
    %1 = vector.broadcast %cst : f32 to vector<1x2048xf32>
    %2 = arith.mulf %1, %0 : vector<1x2048xf32>
    %cst_1 = arith.constant 0.000000e+00 : f32
    %3 = vector.broadcast %cst_1 : f32 to vector<1x2048xf32>
    %4 = arith.cmpf oge, %0, %3 : vector<1x2048xf32>
    %5 = arith.extui %4 : vector<1x2048xi1> to vector<1x2048xi32>
    %6 = arith.sitofp %5 : vector<1x2048xi32> to vector<1x2048xf32>
    %7 = arith.addf %2, %6 : vector<1x2048xf32>
    %c0_2 = arith.constant 0 : index
    %c0_3 = arith.constant 0 : index
    %8 = vector.load %arg2[%c0_2, %c0_3] : memref<1x2048xf32, #tpu.memory_space<vmem>>, vector<1x2048xf32>
    tpu.vector_store %arg2[%c0_2, %c0_3], %7 {strides = array<i32>} : memref<1x2048xf32, #tpu.memory_space<vmem>>, vector<1x2048xf32>,
    return
  }
  func.func @transform_0(%arg0: i32) -> (i32, i32) {
    %c0_i32 = arith.constant 0 : i32
    %c0_i32_0 = arith.constant 0 : i32
    return %arg0, %c0_i32 : i32, i32
  }
  func.func @transform_1(%arg0: i32) -> (i32, i32) {
    %c0_i32 = arith.constant 0 : i32
    %c0_i32_0 = arith.constant 0 : i32
    return %arg0, %c0_i32 : i32, i32
  }
}

</mosaic_0001>

<llo_original>
// kernel: tpu_custom_call.1
$region0: #{tpu_custom_call.1}
  #allocation0 [shape = 'u32[]', space=smem, size = 0x4, offset = 0x4, fixed_abs, tag = 'smem constant byte address 0x4 - core index']
  #allocation1 [shape = 'u32[72,128]{1,0:T(1,128)}', space=vmem, size = 0x9000, scoped, tag = 'internal scratch']
  %s0 = inlined_call_operand.hbm [shape: f32[1,2048], index: 0, kind: input, shape index: {}]
  %s1 = inlined_call_operand.hbm [shape: f32[1,2048], index: 1, kind: output, shape index: {}]
  %s2 = sld [smem:[#allocation0]]
  $region18: #{tpu_custom_call.1} parent=0
    _
  %s4 = ssub.s32 1, %s2
  %s5 = scalar_select 0, %s4, %s2
  $region1: #{tpu_custom_call.1} parent=0
    #allocation2 [shape = 'u8[8192]{0}', space=vmem, size = 0x2000, scoped, tag = 'input window, operand 0, single buffered']
    #allocation3 [shape = 's32[1]{0}', space=sflag, size = 0x4, scoped, tag = 'scoped memory for tpu_custom_call.1']
    #allocation4 [shape = 's32[1]{0}', space=sflag, size = 0x4, scoped, tag = 'scoped memory for tpu_custom_call.1']
    #allocation5 [shape = 'u8[8192]{0}', space=vmem, size = 0x2000, scoped, tag = 'output window, operand 0, single buffered']
    %6 = vsyncpa [#allocation3], 0
    %7 = vsyncpa [#allocation4], 0
    // Predicated region
    $region2: #{tpu_custom_call.1} parent=1 // pred_check
      _
    $region3: #{tpu_custom_call.1} parent=1 // pred_check_branch
      %9 = sbr.rel (0) target = $region5
    $region4: #{tpu_custom_call.1} parent=1 // pred_region
      %11 = vsyncadd [#allocation3], 0
      %s13 = sshll.u32 %s0, 4
      %s14 = int_to_ptr.hbm [resolvable:$true] %s13
      %s15 = sshll.u32 [#allocation2], 4
      %s16 = int_to_ptr.vmem [resolvable:$true] %s15
      %18 = dma.hbm_to_vmem [thread:$0]  %s14, 256, %s16, [#allocation3]
    $region5: #{tpu_custom_call.1} parent=1 // pred_fallthru
      _
    // Predicated region
    $region6: #{tpu_custom_call.1} parent=1 // pred_check
      _
    $region7: #{tpu_custom_call.1} parent=1 // pred_check_branch
      %20 = sbr.rel (0) target = $region9
    $region8: #{tpu_custom_call.1} parent=1 // pred_region
      %22 = dma.done [#allocation3], 256
    $region9: #{tpu_custom_call.1} parent=1 // pred_fallthru
      _
    %v23 = vld [vmem:[#allocation2] sm:$0xff]
    %v24 = vld [vmem:[#allocation2 + $0x8] sm:$0xff]
    %v25 = vmul.f32 %v23, 0.05
    %v26 = vmul.f32 %v24, 0.05
    %vm27 = vcmp.ge.f32.partialorder %v23, 0.0
    %vm28 = vcmp.ge.f32.partialorder %v24, 0.0
    %v29 = vsel %vm27, 1, 0
    %v30 = vsel %vm28, 1, 0
    %v31 = vcvt.s32.f32 %v29
    %v32 = vcvt.s32.f32 %v30
    %v33 = vadd.f32 %v25, %v31
    %v34 = vadd.f32 %v26, %v32
    %35 = vst [vmem:[#allocation5] sm:$0xff] %v33
    %36 = vst [vmem:[#allocation5 + $0x8] sm:$0xff] %v34
    // Predicated region
    $region10: #{tpu_custom_call.1} parent=1 // pred_check
      _
    $region11: #{tpu_custom_call.1} parent=1 // pred_check_branch
      %38 = sbr.rel (0) target = $region13
    $region12: #{tpu_custom_call.1} parent=1 // pred_region
      %40 = vsyncadd [#allocation4], 0
      %s42 = sshll.u32 [#allocation5], 4
      %s43 = int_to_ptr.vmem [resolvable:$true] %s42
      %s44 = sshll.u32 %s1, 4
      %s45 = int_to_ptr.hbm [resolvable:$true] %s44
      %47 = dma.vmem_to_hbm [thread:$0]  %s43, 256, %s45, [#allocation4]
    $region13: #{tpu_custom_call.1} parent=1 // pred_fallthru
      _
    // Predicated region
    $region14: #{tpu_custom_call.1} parent=1 // pred_check
      _
    $region15: #{tpu_custom_call.1} parent=1 // pred_check_branch
      %49 = sbr.rel (0) target = $region17
    $region16: #{tpu_custom_call.1} parent=1 // pred_region
      %51 = dma.done [#allocation4], 256
    $region17: #{tpu_custom_call.1} parent=1 // pred_fallthru
      _
    %52 = vsyncpa [#allocation3], 1
    %53 = vsyncpa [#allocation4], 1

</llo_original>
